<compile_context>
chip_gen: v5e
topology: v5e:2x2
jax: 0.10.0
libtpu: 0.0.40
codegen_flags: <defaults>
</compile_context>

<pallas_src>
import numpy as np

import jax
import jax.numpy as jnp
from jax import lax
from jax.experimental import pallas as pl
from jax.experimental.pallas import tpu as pltpu

# ----------------------------- configuration --------------------------------
HEIGHT = 32      # self.height
N_BOOK = 4       # self.n_book  (n_book != height -> column-repeat path in decode)
D_IN = 300       # Linear input dim in the module
TAU = 0.1        # gumbel_softmax temperature
EPS = 1e-8
BATCH = 8

# Fused / padded lane layouts (all segment starts are multiples of 128).
ENC_W = 512          # [0:300] Wf1.T | [300:384] 0 | [384:416] Wf.T | [416:512] 0
F1_OFF, F_OFF = 0, 384
DEC_W = 384          # [0:300] Wg.T  | [300:384] 0
SMALL_W = 128        # [0:32] code  | [32:64] ctrl | [64:68] ctrl_p | [68:128] 0


def _segment_widths(height, n_book):
    # Replicates the repeat/cat loop inside CodeAutoEncoder.decode().
    widths = []
    h = height
    for i in range(n_book):
        if i + 1 != n_book:
            h = h // 2
        widths.append(h)
    assert sum(widths) == height, "height / n_book combination not representable"
    return widths


_WIDTHS = _segment_widths(HEIGHT, N_BOOK)
_BOUNDARIES = np.cumsum([0] + _WIDTHS[:-1]).tolist()   # start column of each segment


# ------------------------------- the kernel ---------------------------------
def code_ae_kernel(x_ref, wenc_ref, benc_ref, w2_ref, bf2_ref, gum_ref,
                   wdec_ref, bdec_ref, y_slab_ref, small_ref):
    B = x_ref.shape[0]
    x = x_ref[...]                                                       # (B, 300)

    # -------- encode: one fused matmul covers self.f and self.f1 --------
    enc = jnp.dot(x, wenc_ref[...], preferred_element_type=jnp.float32) + benc_ref[...]
    z1 = enc[:, F1_OFF:F1_OFF + D_IN]                # f1(x)             (B, 300)
    h = enc[:, F_OFF:F_OFF + HEIGHT]                 # f(x)              (B, 32)

    # subcode = h + (relu(sign(h)) - h).detach()  -> forward value relu(sign(h))
    code = (h > 0.0).astype(jnp.float32)             # (B, 32)

    # hh = tanh(f1(x)); logits = log(softplus(f2(hh)) + 1e-8)
    hh = jnp.tanh(z1)
    z2 = jnp.dot(hh, w2_ref[...], preferred_element_type=jnp.float32) + bf2_ref[...]  # (B, 4)
    softplus = jnp.maximum(z2, 0.0) + jnp.log(1.0 + jnp.exp(-jnp.abs(z2)))
    logits = jnp.log(softplus + EPS)

    # ctrl_p = gumbel_softmax(logits, tau=0.1, hard=False)
    g = (logits + gum_ref[...]) / TAU
    g = g - jnp.max(g, axis=-1, keepdims=True)
    eg = jnp.exp(g)
    ctrl_p = eg * pl.reciprocal(jnp.sum(eg, axis=-1, keepdims=True), approx=True)  # (B, 4)

    # ctrl_p_discrete = one_hot(argmax(ctrl_p, axis=1))  (first max wins)
    col = lax.broadcasted_iota(jnp.int32, ctrl_p.shape, 1)
    mx = jnp.max(ctrl_p, axis=-1, keepdims=True)
    first = jnp.min(jnp.where(ctrl_p >= mx, col, jnp.int32(N_BOOK)),
                    axis=-1, keepdims=True)
    ctrl_p_d = (col == first).astype(jnp.float32)                        # (B, 4)

    # -------- decode: both branches fused into one (2B, .) pass --------
    # expand[j, k] = 1 iff j >= segment(k): folds reverse-cumsum + column-repeat into one dot.
    kk = lax.broadcasted_iota(jnp.int32, (N_BOOK, HEIGHT), 1)
    jj = lax.broadcasted_iota(jnp.int32, (N_BOOK, HEIGHT), 0)
    seg = jnp.zeros((N_BOOK, HEIGHT), jnp.int32)
    for b in _BOUNDARIES[1:]:                         # static python loop (n_book-1 terms)
        seg = seg + (kk >= b).astype(jnp.int32)
    expand = (jj >= seg).astype(jnp.float32)                             # (4, 32)

    # rows [0:B] = discrete branch, rows [B:2B] = continuous branch
    cp_stack = jnp.concatenate([ctrl_p_d, ctrl_p], axis=0)               # (2B, 4)
    code_stack = jnp.concatenate([code, code], axis=0)                   # (2B, 32)

    ctrl_stack = jnp.dot(cp_stack, expand, preferred_element_type=jnp.float32)  # (2B, 32)
    z_stack = code_stack * ctrl_stack                                    # (2B, 32)
    y_stack = (jnp.dot(z_stack, wdec_ref[...], preferred_element_type=jnp.float32)
               + bdec_ref[...])                                          # (2B, 384)

    # -------- lane-dense output slabs --------
    y_slab_ref[...] = y_stack                                            # (2B, 384)
    small_ref[...] = jnp.concatenate(
        [z_stack, ctrl_stack, cp_stack,
         jnp.zeros((2 * B, SMALL_W - 2 * HEIGHT - N_BOOK), jnp.float32)],
        axis=1)                                                          # (2B, 128)


# ------------------------ one-time parameter preparation ---------------------
def prepare_params(params):
    """Transpose + lane-pad weights ONCE (outside the per-step jitted forward)."""
    Wf, bf = params["Wf"], params["bf"]        # (32, 300), (32,)
    Wf1, bf1 = params["Wf1"], params["bf1"]    # (300, 300), (300,)
    Wf2, bf2 = params["Wf2"], params["bf2"]    # (4, 300), (4,)
    Wg, bg = params["Wg"], params["bg"]        # (300, 32), (300,)

    wenc = jnp.zeros((D_IN, ENC_W), jnp.float32)
    wenc = wenc.at[:, F1_OFF:F1_OFF + D_IN].set(Wf1.T)
    wenc = wenc.at[:, F_OFF:F_OFF + HEIGHT].set(Wf.T)
    benc = jnp.zeros((1, ENC_W), jnp.float32)
    benc = benc.at[:, F1_OFF:F1_OFF + D_IN].set(bf1[None, :])
    benc = benc.at[:, F_OFF:F_OFF + HEIGHT].set(bf[None, :])

    wdec = jnp.zeros((HEIGHT, DEC_W), jnp.float32).at[:, :D_IN].set(Wg.T)
    bdec = jnp.zeros((1, DEC_W), jnp.float32).at[:, :D_IN].set(bg[None, :])

    return dict(wenc=wenc, benc=benc, w2=Wf2.T, bf2=bf2.reshape(1, -1),
                wdec=wdec, bdec=bdec)


# ------------------------------- the wrapper ---------------------------------
@jax.jit
def code_autoencoder_forward(x, prepped, gumbel):
    B = x.shape[0]
    vmem = pl.BlockSpec(memory_space=pltpu.MemorySpace.VMEM)
    inputs = (x, prepped["wenc"], prepped["benc"], prepped["w2"], prepped["bf2"],
              gumbel, prepped["wdec"], prepped["bdec"])

    # Gridless single block: total resident data < 1 MiB -> fine on v5e/v6e/v7x VMEM.
    # TODO(synk): for B >> 256, add a batch grid with dimension_semantics=("parallel",)
    # so v7x's second TensorCore takes half the rows and I/O pipelines.
    y_slab, small = pl.pallas_call(
        code_ae_kernel,
        out_shape=(jax.ShapeDtypeStruct((2 * B, DEC_W), jnp.float32),
                   jax.ShapeDtypeStruct((2 * B, SMALL_W), jnp.float32)),
        in_specs=[vmem] * len(inputs),
        out_specs=(vmem, vmem),
    )(*inputs)

    # Cheap XLA-side unpacking of the lane-dense slabs.
    yy = y_slab[:B, :D_IN]                      # discrete branch
    y = y_slab[B:, :D_IN]                       # continuous branch
    code_d = small[:B, :HEIGHT]
    ctrl_d = small[:B, HEIGHT:2 * HEIGHT]
    code_c = small[B:, :HEIGHT]
    ctrl_c = small[B:, HEIGHT:2 * HEIGHT]
    ctrl_p = small[B:, 2 * HEIGHT:2 * HEIGHT + N_BOOK]
    return ctrl_p, (y, code_c, ctrl_c), (yy, code_d, ctrl_d)


# ------------------------- pure-JAX reference (for check) --------------------
def reference_forward(x, params, gumbel):
    Wf, bf = params["Wf"], params["bf"]
    Wf1, bf1 = params["Wf1"], params["bf1"]
    Wf2, bf2 = params["Wf2"], params["bf2"]
    Wg, bg = params["Wg"], params["bg"]

    h = x @ Wf.T + bf
    code = jnp.where(h > 0, 1.0, 0.0)
    hh = jnp.tanh(x @ Wf1.T + bf1)
    logits = jnp.log(jax.nn.softplus(hh @ Wf2.T + bf2) + EPS)
    ctrl_p = jax.nn.softmax((logits + gumbel) / TAU, axis=-1)
    ctrl_p_d = jax.nn.one_hot(jnp.argmax(ctrl_p, axis=1), N_BOOK, dtype=jnp.float32)

    widths = _segment_widths(HEIGHT, N_BOOK)

    def decode(cp):
        ctrl = jnp.flip(jnp.cumsum(jnp.flip(cp, 1), 1), 1)
        parts = [jnp.repeat(ctrl[:, i:i + 1], w, axis=1) for i, w in enumerate(widths)]
        new_ctrl = jnp.concatenate(parts, axis=1)
        z = code * new_ctrl
        y = z @ Wg.T + bg
        return y, z, new_ctrl

    yy, code_d, ctrl_d = decode(ctrl_p_d)
    y, code_c, ctrl_c = decode(ctrl_p)
    return ctrl_p, (y, code_c, ctrl_c), (yy, code_d, ctrl_d)


# ----------------------------------- main ------------------------------------
if __name__ == "__main__":
    key = jax.random.PRNGKey(0)
    keys = jax.random.split(key, 10)

    def lin_init(kw, kb, out_dim, in_dim):
        bound = 1.0 / np.sqrt(in_dim)
        W = jax.random.uniform(kw, (out_dim, in_dim), jnp.float32, -bound, bound)
        b = jax.random.uniform(kb, (out_dim,), jnp.float32, -bound, bound)
        return W, b

    Wf, bf = lin_init(keys[0], keys[1], HEIGHT, D_IN)     # self.f
    Wf1, bf1 = lin_init(keys[2], keys[3], D_IN, D_IN)     # self.f1
    Wf2, bf2 = lin_init(keys[4], keys[5], N_BOOK, D_IN)   # self.f2
    Wg, bg = lin_init(keys[6], keys[7], D_IN, HEIGHT)     # self.g
    params = dict(Wf=Wf, bf=bf, Wf1=Wf1, bf1=bf1, Wf2=Wf2, bf2=bf2, Wg=Wg, bg=bg)

    x = jax.random.normal(keys[8], (BATCH, D_IN), jnp.float32)
    gumbel = jax.random.gumbel(keys[9], (BATCH, N_BOOK), jnp.float32)

    prepped = prepare_params(params)          # one-time layout prep (hoisted out of the jit)
    prepped = jax.tree_util.tree_map(jax.block_until_ready, prepped)

    out = code_autoencoder_forward(x, prepped, gumbel)
    out = jax.block_until_ready(out)

    ref = reference_forward(x, params, gumbel)

    def _flat(t):
        leaves, _ = jax.tree_util.tree_flatten(t)
        return leaves

    for a, b in zip(_flat(out), _flat(ref)):
        np.testing.assert_allclose(np.asarray(a), np.asarray(b), rtol=2e-3, atol=2e-3)

    print("KERNEL_OK")
</pallas_src>

<mosaic_0001>
module attributes {stable_mosaic.version = 11 : i64} {
  func.func @code_ae_kernel(%arg0: memref<8x300xf32, #tpu.memory_space<vmem>>, %arg1: memref<300x512xf32, #tpu.memory_space<vmem>>, %arg2: memref<1x512xf32, #tpu.memory_space<vmem>>, %arg3: memref<300x4xf32, #tpu.memory_space<vmem>>, %arg4: memref<1x4xf32, #tpu.memory_space<vmem>>, %arg5: memref<8x4xf32, #tpu.memory_space<vmem>>, %arg6: memref<32x384xf32, #tpu.memory_space<vmem>>, %arg7: memref<1x384xf32, #tpu.memory_space<vmem>>, %arg8: memref<16x384xf32, #tpu.memory_space<vmem>>, %arg9: memref<16x128xf32, #tpu.memory_space<vmem>>) attributes {dimension_semantics = [], scalar_prefetch = 0 : i64, scratch_operands = 0 : i64, tpu.core_type = #tpu.core_type<tc>} {
    %c0 = arith.constant 0 : index
    %c0_0 = arith.constant 0 : index
    %0 = vector.load %arg0[%c0, %c0_0] : memref<8x300xf32, #tpu.memory_space<vmem>>, vector<8x300xf32>
    %c0_1 = arith.constant 0 : index
    %c0_2 = arith.constant 0 : index
    %1 = vector.load %arg1[%c0_1, %c0_2] : memref<300x512xf32, #tpu.memory_space<vmem>>, vector<300x512xf32>
    %cst = arith.constant dense<0.000000e+00> : vector<8x512xf32>
    %2 = tpu.matmul %0, %1, %cst {dimension_numbers = #tpu.dot_dimension_numbers<[1], [0], [0], [1], [0, 0, 1, 1], [], []>} : vector<8x300xf32>, vector<300x512xf32>, vector<8x512xf32> -> vector<8x512xf32>
    %c0_3 = arith.constant 0 : index
    %c0_4 = arith.constant 0 : index
    %3 = vector.load %arg2[%c0_3, %c0_4] : memref<1x512xf32, #tpu.memory_space<vmem>>, vector<1x512xf32>
    %4 = vector.broadcast %3 : vector<1x512xf32> to vector<8x512xf32>
    %5 = arith.addf %2, %4 : vector<8x512xf32>
    %6 = vector.extract_strided_slice %5 {offsets = [0, 0], sizes = [8, 300], strides = [1, 1]} : vector<8x512xf32> to vector<8x300xf32>
    %7 = vector.extract_strided_slice %5 {offsets = [0, 384], sizes = [8, 32], strides = [1, 1]} : vector<8x512xf32> to vector<8x32xf32>
    %cst_5 = arith.constant 0.000000e+00 : f32
    %8 = vector.broadcast %cst_5 : f32 to vector<8x32xf32>
    %9 = arith.cmpf ogt, %7, %8 : vector<8x32xf32>
    %10 = arith.extui %9 : vector<8x32xi1> to vector<8x32xi32>
    %11 = arith.sitofp %10 : vector<8x32xi32> to vector<8x32xf32>
    %12 = math.tanh %6 : vector<8x300xf32>
    %c0_6 = arith.constant 0 : index
    %c0_7 = arith.constant 0 : index
    %13 = vector.load %arg3[%c0_6, %c0_7] : memref<300x4xf32, #tpu.memory_space<vmem>>, vector<300x4xf32>
    %cst_8 = arith.constant dense<0.000000e+00> : vector<8x4xf32>
    %14 = tpu.matmul %12, %13, %cst_8 {dimension_numbers = #tpu.dot_dimension_numbers<[1], [0], [0], [1], [0, 0, 1, 1], [], []>} : vector<8x300xf32>, vector<300x4xf32>, vector<8x4xf32> -> vector<8x4xf32>
    %c0_9 = arith.constant 0 : index
    %c0_10 = arith.constant 0 : index
    %15 = vector.load %arg4[%c0_9, %c0_10] : memref<1x4xf32, #tpu.memory_space<vmem>>, vector<1x4xf32>
    %16 = vector.broadcast %15 : vector<1x4xf32> to vector<8x4xf32>
    %17 = arith.addf %14, %16 : vector<8x4xf32>
    %cst_11 = arith.constant 0.000000e+00 : f32
    %18 = vector.broadcast %cst_11 : f32 to vector<8x4xf32>
    %19 = arith.maximumf %17, %18 : vector<8x4xf32>
    %20 = math.absf %17 : vector<8x4xf32>
    %cst_12 = arith.constant 0.000000e+00 : f32
    %21 = vector.broadcast %cst_12 : f32 to vector<8x4xf32>
    %22 = arith.subf %21, %20 : vector<8x4xf32>
    %23 = math.exp %22 : vector<8x4xf32>
    %cst_13 = arith.constant 1.000000e+00 : f32
    %24 = vector.broadcast %cst_13 : f32 to vector<8x4xf32>
    %25 = arith.addf %24, %23 : vector<8x4xf32>
    %26 = math.log %25 : vector<8x4xf32>
    %27 = arith.addf %19, %26 : vector<8x4xf32>
    %cst_14 = arith.constant 9.99999993E-9 : f32
    %28 = vector.broadcast %cst_14 : f32 to vector<8x4xf32>
    %29 = arith.addf %27, %28 : vector<8x4xf32>
    %30 = math.log %29 : vector<8x4xf32>
    %c0_15 = arith.constant 0 : index
    %c0_16 = arith.constant 0 : index
    %31 = vector.load %arg5[%c0_15, %c0_16] : memref<8x4xf32, #tpu.memory_space<vmem>>, vector<8x4xf32>
    %32 = arith.addf %30, %31 : vector<8x4xf32>
    %cst_17 = arith.constant 1.000000e-01 : f32
    %33 = vector.broadcast %cst_17 : f32 to vector<8x4xf32>
    %34 = arith.divf %32, %33 : vector<8x4xf32>
    %cst_18 = arith.constant dense<0xFF800000> : vector<8xf32>
    %35 = vector.multi_reduction <maximumf>, %34, %cst_18 [1] : vector<8x4xf32> to vector<8xf32>
    %36 = vector.shape_cast %35 : vector<8xf32> to vector<8x1xf32>
    %37 = vector.broadcast %36 : vector<8x1xf32> to vector<8x4xf32>
    %38 = arith.subf %34, %37 : vector<8x4xf32>
    %39 = math.exp %38 : vector<8x4xf32>
    %cst_19 = arith.constant dense<0.000000e+00> : vector<8xf32>
    %40 = vector.multi_reduction <add>, %39, %cst_19 [1] : vector<8x4xf32> to vector<8xf32>
    %41 = vector.shape_cast %40 : vector<8xf32> to vector<8x1xf32>
    %42 = tpu.reciprocal %41 {approx = true} : vector<8x1xf32> -> vector<8x1xf32>
    %43 = vector.broadcast %42 : vector<8x1xf32> to vector<8x4xf32>
    %44 = arith.mulf %39, %43 : vector<8x4xf32>
    %45 = tpu.iota {dimensions = array<i32: 1>} : vector<8x4xi32>
    %cst_20 = arith.constant dense<0xFF800000> : vector<8xf32>
    %46 = vector.multi_reduction <maximumf>, %44, %cst_20 [1] : vector<8x4xf32> to vector<8xf32>
    %47 = vector.shape_cast %46 : vector<8xf32> to vector<8x1xf32>
    %48 = vector.broadcast %47 : vector<8x1xf32> to vector<8x4xf32>
    %49 = arith.cmpf oge, %44, %48 : vector<8x4xf32>
    %c4_i32 = arith.constant 4 : i32
    %50 = vector.broadcast %c4_i32 : i32 to vector<8x4xi32>
    %51 = arith.select %49, %45, %50 : vector<8x4xi1>, vector<8x4xi32>
    %cst_21 = arith.constant dense<2147483647> : vector<8xi32>
    %52 = vector.multi_reduction <minsi>, %51, %cst_21 [1] : vector<8x4xi32> to vector<8xi32>
    %53 = vector.shape_cast %52 : vector<8xi32> to vector<8x1xi32>
    %54 = vector.broadcast %53 : vector<8x1xi32> to vector<8x4xi32>
    %55 = arith.cmpi eq, %45, %54 : vector<8x4xi32>
    %56 = arith.extui %55 : vector<8x4xi1> to vector<8x4xi32>
    %57 = arith.sitofp %56 : vector<8x4xi32> to vector<8x4xf32>
    %58 = tpu.iota {dimensions = array<i32: 1>} : vector<4x32xi32>
    %59 = tpu.iota {dimensions = array<i32: 0>} : vector<4x32xi32>
    %c0_i32 = arith.constant 0 : i32
    %60 = vector.broadcast %c0_i32 : i32 to vector<4x32xi32>
    %c16_i32 = arith.constant 16 : i32
    %61 = vector.broadcast %c16_i32 : i32 to vector<4x32xi32>
    %62 = arith.cmpi sge, %58, %61 : vector<4x32xi32>
    %63 = arith.extui %62 : vector<4x32xi1> to vector<4x32xi32>
    %64 = arith.addi %60, %63 : vector<4x32xi32>
    %c24_i32 = arith.constant 24 : i32
    %65 = vector.broadcast %c24_i32 : i32 to vector<4x32xi32>
    %66 = arith.cmpi sge, %58, %65 : vector<4x32xi32>
    %67 = arith.extui %66 : vector<4x32xi1> to vector<4x32xi32>
    %68 = arith.addi %64, %67 : vector<4x32xi32>
    %c28_i32 = arith.constant 28 : i32
    %69 = vector.broadcast %c28_i32 : i32 to vector<4x32xi32>
    %70 = arith.cmpi sge, %58, %69 : vector<4x32xi32>
    %71 = arith.extui %70 : vector<4x32xi1> to vector<4x32xi32>
    %72 = arith.addi %68, %71 : vector<4x32xi32>
    %73 = arith.cmpi sge, %59, %72 : vector<4x32xi32>
    %74 = arith.extui %73 : vector<4x32xi1> to vector<4x32xi32>
    %75 = arith.sitofp %74 : vector<4x32xi32> to vector<4x32xf32>
    %76 = tpu.concatenate %57, %44 in 0 : vector<8x4xf32>, vector<8x4xf32> -> vector<16x4xf32>
    %77 = tpu.concatenate %11, %11 in 0 : vector<8x32xf32>, vector<8x32xf32> -> vector<16x32xf32>
    %cst_22 = arith.constant dense<0.000000e+00> : vector<16x32xf32>
    %78 = tpu.matmul %76, %75, %cst_22 {dimension_numbers = #tpu.dot_dimension_numbers<[1], [0], [0], [1], [0, 0, 1, 1], [], []>} : vector<16x4xf32>, vector<4x32xf32>, vector<16x32xf32> -> vector<16x32xf32>
    %79 = arith.mulf %77, %78 : vector<16x32xf32>
    %c0_23 = arith.constant 0 : index
    %c0_24 = arith.constant 0 : index
    %80 = vector.load %arg6[%c0_23, %c0_24] : memref<32x384xf32, #tpu.memory_space<vmem>>, vector<32x384xf32>
    %cst_25 = arith.constant dense<0.000000e+00> : vector<16x384xf32>
    %81 = tpu.matmul %79, %80, %cst_25 {dimension_numbers = #tpu.dot_dimension_numbers<[1], [0], [0], [1], [0, 0, 1, 1], [], []>} : vector<16x32xf32>, vector<32x384xf32>, vector<16x384xf32> -> vector<16x384xf32>
    %c0_26 = arith.constant 0 : index
    %c0_27 = arith.constant 0 : index
    %82 = vector.load %arg7[%c0_26, %c0_27] : memref<1x384xf32, #tpu.memory_space<vmem>>, vector<1x384xf32>
    %83 = vector.broadcast %82 : vector<1x384xf32> to vector<16x384xf32>
    %84 = arith.addf %81, %83 : vector<16x384xf32>
    %c0_28 = arith.constant 0 : index
    %c0_29 = arith.constant 0 : index
    %85 = vector.load %arg8[%c0_28, %c0_29] : memref<16x384xf32, #tpu.memory_space<vmem>>, vector<16x384xf32>
    tpu.vector_store %arg8[%c0_28, %c0_29], %84 {strides = array<i32>} : memref<16x384xf32, #tpu.memory_space<vmem>>, vector<16x384xf32>,
    %cst_30 = arith.constant 0.000000e+00 : f32
    %86 = vector.broadcast %cst_30 : f32 to vector<16x60xf32>
    %87 = tpu.concatenate %79, %78, %76, %86 in 1 : vector<16x32xf32>, vector<16x32xf32>, vector<16x4xf32>, vector<16x60xf32> -> vector<16x128xf32>
    %c0_31 = arith.constant 0 : index
    %c0_32 = arith.constant 0 : index
    %88 = vector.load %arg9[%c0_31, %c0_32] : memref<16x128xf32, #tpu.memory_space<vmem>>, vector<16x128xf32>
    tpu.vector_store %arg9[%c0_31, %c0_32], %87 {strides = array<i32>} : memref<16x128xf32, #tpu.memory_space<vmem>>, vector<16x128xf32>,
    return
  }
}

</mosaic_0001>

<llo_original>
// kernel: code_autoencoder_forward.1
$region0: #{code_autoencoder_forward.1}
  #allocation0 [shape = 'u32[]', space=smem, size = 0x4, offset = 0x4, fixed_abs, tag = 'smem constant byte address 0x4 - core index']
  #allocation1 [shape = 'u32[72,128]{1,0:T(1,128)}', space=vmem, size = 0x9000, scoped, tag = 'internal scratch']
  %s0 = inlined_call_operand.vmem [shape: f32[8,300], index: 0, kind: input, shape index: {}]
  %s1 = inlined_call_operand.hbm [shape: f32[300,512], index: 1, kind: input, shape index: {}]
  %s2 = inlined_call_operand.vmem [shape: f32[1,512], index: 2, kind: input, shape index: {}]
  %s3 = inlined_call_operand.vmem [shape: f32[300,4], index: 3, kind: input, shape index: {}]
  %s4 = inlined_call_operand.vmem [shape: f32[1,4], index: 4, kind: input, shape index: {}]
  %s5 = inlined_call_operand.vmem [shape: f32[8,4], index: 5, kind: input, shape index: {}]
  %s6 = inlined_call_operand.vmem [shape: f32[32,384], index: 6, kind: input, shape index: {}]
  %s7 = inlined_call_operand.vmem [shape: f32[1,384], index: 7, kind: input, shape index: {}]
  %s8 = inlined_call_operand.vmem [shape: f32[16,384], index: 8, kind: output, shape index: {0}]
  %s9 = inlined_call_operand.vmem [shape: f32[16,128], index: 9, kind: output, shape index: {1}]
  %10 = xla_tuple %s8, %s9
  %s11 = sld [smem:[#allocation0]]
  $region54: #{code_autoencoder_forward.1} parent=0
    _
  %s13 = ssub.s32 1, %s11
  %s14 = scalar_select 0, %s13, %s11
  $region1: #{code_autoencoder_forward.1} parent=0
    #allocation2 [shape = 'u8[622592]{0}', space=vmem, size = 0x98000, scoped, tag = 'input window, operand 1, single buffered']
    #allocation3 [shape = 's32[1]{0}', space=sflag, size = 0x4, scoped, tag = 'scoped memory for code_autoencoder_forward.1']
    %15 = vsyncpa [#allocation3], 0
    // Predicated region
    $region2: #{code_autoencoder_forward.1} parent=1 // pred_check
      _
    $region3: #{code_autoencoder_forward.1} parent=1 // pred_check_branch
      %17 = sbr.rel (0) target = $region5
    $region4: #{code_autoencoder_forward.1} parent=1 // pred_region
      _
    $region5: #{code_autoencoder_forward.1} parent=1 // pred_fallthru
      _
    // Predicated region
    $region6: #{code_autoencoder_forward.1} parent=1 // pred_check
      _
    $region7: #{code_autoencoder_forward.1} parent=1 // pred_check_branch
      %19 = sbr.rel (0) target = $region9
    $region8: #{code_autoencoder_forward.1} parent=1 // pred_region
      %21 = vsyncadd [#allocation3], 0
      %s22 = sshll.u32 %s1, 4
      %s23 = int_to_ptr.hbm [resolvable:$true] %s22
      %s24 = sshll.u32 [#allocation2], 4
      %s25 = int_to_ptr.vmem [resolvable:$true] %s24
      %30 = dma.hbm_to_vmem [thread:$0]  %s23, 19456, %s25, [#allocation3], 512, 512, 32
    $region9: #{code_autoencoder_forward.1} parent=1 // pred_fallthru
      _
    // Predicated region
    $region10: #{code_autoencoder_forward.1} parent=1 // pred_check
      _
    $region11: #{code_autoencoder_forward.1} parent=1 // pred_check_branch
      %32 = sbr.rel (0) target = $region13
    $region12: #{code_autoencoder_forward.1} parent=1 // pred_region
      _
    $region13: #{code_autoencoder_forward.1} parent=1 // pred_fallthru
      _
    // Predicated region
    $region14: #{code_autoencoder_forward.1} parent=1 // pred_check
      _
    $region15: #{code_autoencoder_forward.1} parent=1 // pred_check_branch
      %34 = sbr.rel (0) target = $region17
    $region16: #{code_autoencoder_forward.1} parent=1 // pred_region
      _
    $region17: #{code_autoencoder_forward.1} parent=1 // pred_fallthru
      _
    // Predicated region
    $region18: #{code_autoencoder_forward.1} parent=1 // pred_check
      _
    $region19: #{code_autoencoder_forward.1} parent=1 // pred_check_branch
      %36 = sbr.rel (0) target = $region21
    $region20: #{code_autoencoder_forward.1} parent=1 // pred_region
      _
    $region21: #{code_autoencoder_forward.1} parent=1 // pred_fallthru
      _
    // Predicated region
    $region22: #{code_autoencoder_forward.1} parent=1 // pred_check
      _
    $region23: #{code_autoencoder_forward.1} parent=1 // pred_check_branch
      %38 = sbr.rel (0) target = $region25
    $region24: #{code_autoencoder_forward.1} parent=1 // pred_region
      _
    $region25: #{code_autoencoder_forward.1} parent=1 // pred_fallthru
      _
    // Predicated region
    $region26: #{code_autoencoder_forward.1} parent=1 // pred_check
      _
    $region27: #{code_autoencoder_forward.1} parent=1 // pred_check_branch
      %40 = sbr.rel (0) target = $region29
    $region28: #{code_autoencoder_forward.1} parent=1 // pred_region
      _
    $region29: #{code_autoencoder_forward.1} parent=1 // pred_fallthru
      _
    // Predicated region
    $region30: #{code_autoencoder_forward.1} parent=1 // pred_check
      _
    $region31: #{code_autoencoder_forward.1} parent=1 // pred_check_branch
      %42 = sbr.rel (0) target = $region33
    $region32: #{code_autoencoder_forward.1} parent=1 // pred_region
      _
    $region33: #{code_autoencoder_forward.1} parent=1 // pred_fallthru
      _
    // Predicated region
    $region34: #{code_autoencoder_forward.1} parent=1 // pred_check
      _
    $region35: #{code_autoencoder_forward.1} parent=1 // pred_check_branch
      %44 = sbr.rel (0) target = $region37
    $region36: #{code_autoencoder_forward.1} parent=1 // pred_region
      %46 = dma.done [#allocation3], 19456
    $region37: #{code_autoencoder_forward.1} parent=1 // pred_fallthru
      _
    %v47 = vld [vmem:[%s0] sm:$0xff]
    %v48 = vld [vmem:[%s0 + $0x8] sm:$0xff]
    %v49 = vld [vmem:[%s0 + $0x10] sm:$0xff]
    %v50 = vld [vmem:[#allocation2] sm:$0xff]
    %v51 = vld [vmem:[#allocation2 + $0x8] sm:$0xff]
    %v52 = vld [vmem:[#allocation2 + $0x10] sm:$0xff]
    %v53 = vld [vmem:[#allocation2 + $0x18] sm:$0xff]
    %v54 = vld [vmem:[#allocation2 + $0x20] sm:$0xff]
    %v55 = vld [vmem:[#allocation2 + $0x28] sm:$0xff]
    %v56 = vld [vmem:[#allocation2 + $0x30] sm:$0xff]
    %v57 = vld [vmem:[#allocation2 + $0x38] sm:$0xff]
    %v58 = vld [vmem:[#allocation2 + $0x40] sm:$0xff]
    %v59 = vld [vmem:[#allocation2 + $0x48] sm:$0xff]
    %v60 = vld [vmem:[#allocation2 + $0x50] sm:$0xff]
    %v61 = vld [vmem:[#allocation2 + $0x58] sm:$0xff]
    %v62 = vld [vmem:[#allocation2 + $0x60] sm:$0xff]
    %v63 = vld [vmem:[#allocation2 + $0x68] sm:$0xff]
    %v64 = vld [vmem:[#allocation2 + $0x70] sm:$0xff]
    %v65 = vld [vmem:[#allocation2 + $0x78] sm:$0xff]
    %v66 = vld [vmem:[#allocation2 + $0x80] sm:$0xff]
    %v67 = vld [vmem:[#allocation2 + $0x88] sm:$0xff]
    %v68 = vld [vmem:[#allocation2 + $0x90] sm:$0xff]
    %v69 = vld [vmem:[#allocation2 + $0x98] sm:$0xff]
    %v70 = vld [vmem:[#allocation2 + $0xa0] sm:$0xff]
    %v71 = vld [vmem:[#allocation2 + $0xa8] sm:$0xff]
    %v72 = vld [vmem:[#allocation2 + $0xb0] sm:$0xff]
    %v73 = vld [vmem:[#allocation2 + $0xb8] sm:$0xff]
    %v74 = vld [vmem:[#allocation2 + $0xc0] sm:$0xff]
    %v75 = vld [vmem:[#allocation2 + $0xc8] sm:$0xff]
    %v76 = vld [vmem:[#allocation2 + $0xd0] sm:$0xff]
    %v77 = vld [vmem:[#allocation2 + $0xd8] sm:$0xff]
    %v78 = vld [vmem:[#allocation2 + $0xe0] sm:$0xff]
    %v79 = vld [vmem:[#allocation2 + $0xe8] sm:$0xff]
    %v80 = vld [vmem:[#allocation2 + $0xf0] sm:$0xff]
    %v81 = vld [vmem:[#allocation2 + $0xf8] sm:$0xff]
    %v82 = vld [vmem:[#allocation2 + $0x100] sm:$0xff]
    %v83 = vld [vmem:[#allocation2 + $0x108] sm:$0xff]
    %v84 = vld [vmem:[#allocation2 + $0x110] sm:$0xff]
    %v85 = vld [vmem:[#allocation2 + $0x118] sm:$0xff]
    %v86 = vld [vmem:[#allocation2 + $0x120] sm:$0xff]
    %v87 = vld [vmem:[#allocation2 + $0x128] sm:$0xff]
    %v88 = vld [vmem:[#allocation2 + $0x130] sm:$0xff]
    %v89 = vld [vmem:[#allocation2 + $0x138] sm:$0xff]
    %v90 = vld [vmem:[#allocation2 + $0x140] sm:$0xff]
    %v91 = vld [vmem:[#allocation2 + $0x148] sm:$0xff]
    %v92 = vld [vmem:[#allocation2 + $0x150] sm:$0xff]
    %v93 = vld [vmem:[#allocation2 + $0x158] sm:$0xff]
    %v94 = vld [vmem:[#allocation2 + $0x160] sm:$0xff]
    %v95 = vld [vmem:[#allocation2 + $0x168] sm:$0xff]
    %v96 = vld [vmem:[#allocation2 + $0x170] sm:$0xff]
    %v97 = vld [vmem:[#allocation2 + $0x178] sm:$0xff]
    %v98 = vld [vmem:[#allocation2 + $0x180] sm:$0xff]
    %v99 = vld [vmem:[#allocation2 + $0x188] sm:$0xff]
    %v100 = vld [vmem:[#allocation2 + $0x190] sm:$0xff]
    %v101 = vld [vmem:[#allocation2 + $0x198] sm:$0xff]
    %v102 = vld [vmem:[#allocation2 + $0x1a0] sm:$0xff]
    %v103 = vld [vmem:[#allocation2 + $0x1a8] sm:$0xff]
    %v104 = vld [vmem:[#allocation2 + $0x1b0] sm:$0xff]
    %v105 = vld [vmem:[#allocation2 + $0x1b8] sm:$0xff]
    %v106 = vld [vmem:[#allocation2 + $0x1c0] sm:$0xff]
    %v107 = vld [vmem:[#allocation2 + $0x1c8] sm:$0xff]
    %v108 = vld [vmem:[#allocation2 + $0x1d0] sm:$0xff]
    %v109 = vld [vmem:[#allocation2 + $0x1d8] sm:$0xff]
    %v110 = vld [vmem:[#allocation2 + $0x1e0] sm:$0xff]
    %v111 = vld [vmem:[#allocation2 + $0x1e8] sm:$0xff]
    %v112 = vld [vmem:[#allocation2 + $0x1f0] sm:$0xff]
    %v113 = vld [vmem:[#allocation2 + $0x1f8] sm:$0xff]
    %v114 = vld [vmem:[#allocation2 + $0x200] sm:$0xff]
    %v115 = vld [vmem:[#allocation2 + $0x208] sm:$0xff]
    %v116 = vld [vmem:[#allocation2 + $0x210] sm:$0xff]
    %v117 = vld [vmem:[#allocation2 + $0x218] sm:$0xff]
    %v118 = vld [vmem:[#allocation2 + $0x220] sm:$0xff]
    %v119 = vld [vmem:[#allocation2 + $0x228] sm:$0xff]
    %v120 = vld [vmem:[#allocation2 + $0x230] sm:$0xff]
    %v121 = vld [vmem:[#allocation2 + $0x238] sm:$0xff]
    %v122 = vld [vmem:[#allocation2 + $0x240] sm:$0xff]
    %v123 = vld [vmem:[#allocation2 + $0x248] sm:$0xff]
    %v124 = vld [vmem:[#allocation2 + $0x250] sm:$0xff]
    %v125 = vld [vmem:[#allocation2 + $0x258] sm:$0xff]
    %v126 = vld [vmem:[#allocation2 + $0x260] sm:$0xff]
    %v127 = vld [vmem:[#allocation2 + $0x268] sm:$0xff]
    %v128 = vld [vmem:[#allocation2 + $0x270] sm:$0xff]
    %v129 = vld [vmem:[#allocation2 + $0x278] sm:$0xff]
    %v130 = vld [vmem:[#allocation2 + $0x280] sm:$0xff]
    %v131 = vld [vmem:[#allocation2 + $0x288] sm:$0xff]
    %v132 = vld [vmem:[#allocation2 + $0x290] sm:$0xff]
    %v133 = vld [vmem:[#allocation2 + $0x298] sm:$0xff]
    %v134 = vld [vmem:[#allocation2 + $0x2a0] sm:$0xff]
    %v135 = vld [vmem:[#allocation2 + $0x2a8] sm:$0xff]
    %v136 = vld [vmem:[#allocation2 + $0x2b0] sm:$0xff]
    %v137 = vld [vmem:[#allocation2 + $0x2b8] sm:$0xff]
    %v138 = vld [vmem:[#allocation2 + $0x2c0] sm:$0xff]
    %v139 = vld [vmem:[#allocation2 + $0x2c8] sm:$0xff]
    %v140 = vld [vmem:[#allocation2 + $0x2d0] sm:$0xff]
    %v141 = vld [vmem:[#allocation2 + $0x2d8] sm:$0xff]
    %v142 = vld [vmem:[#allocation2 + $0x2e0] sm:$0xff]
    %v143 = vld [vmem:[#allocation2 + $0x2e8] sm:$0xff]
    %v144 = vld [vmem:[#allocation2 + $0x2f0] sm:$0xff]
    %v145 = vld [vmem:[#allocation2 + $0x2f8] sm:$0xff]
    %v146 = vld [vmem:[#allocation2 + $0x300] sm:$0xff]
    %v147 = vld [vmem:[#allocation2 + $0x308] sm:$0xff]
    %v148 = vld [vmem:[#allocation2 + $0x310] sm:$0xff]
    %v149 = vld [vmem:[#allocation2 + $0x318] sm:$0xff]
    %v150 = vld [vmem:[#allocation2 + $0x320] sm:$0xff]
    %v151 = vld [vmem:[#allocation2 + $0x328] sm:$0xff]
    %v152 = vld [vmem:[#allocation2 + $0x330] sm:$0xff]
    %v153 = vld [vmem:[#allocation2 + $0x338] sm:$0xff]
    %v154 = vld [vmem:[#allocation2 + $0x340] sm:$0xff]
    %v155 = vld [vmem:[#allocation2 + $0x348] sm:$0xff]
    %v156 = vld [vmem:[#allocation2 + $0x350] sm:$0xff]
    %v157 = vld [vmem:[#allocation2 + $0x358] sm:$0xff]
    %v158 = vld [vmem:[#allocation2 + $0x360] sm:$0xff]
    %v159 = vld [vmem:[#allocation2 + $0x368] sm:$0xff]
    %v160 = vld [vmem:[#allocation2 + $0x370] sm:$0xff]
    %v161 = vld [vmem:[#allocation2 + $0x378] sm:$0xff]
    %v162 = vld [vmem:[#allocation2 + $0x380] sm:$0xff]
    %v163 = vld [vmem:[#allocation2 + $0x388] sm:$0xff]
    %v164 = vld [vmem:[#allocation2 + $0x390] sm:$0xff]
    %v165 = vld [vmem:[#allocation2 + $0x398] sm:$0xff]
    %v166 = vld [vmem:[#allocation2 + $0x3a0] sm:$0xff]
    %v167 = vld [vmem:[#allocation2 + $0x3a8] sm:$0xff]
    %v168 = vld [vmem:[#allocation2 + $0x3b0] sm:$0xff]
    %v169 = vld [vmem:[#allocation2 + $0x3b8] sm:$0xff]
    %v170 = vld [vmem:[#allocation2 + $0x3c0] sm:$0xff]
    %v171 = vld [vmem:[#allocation2 + $0x3c8] sm:$0xff]
    %v172 = vld [vmem:[#allocation2 + $0x3d0] sm:$0xff]
    %v173 = vld [vmem:[#allocation2 + $0x3d8] sm:$0xff]
    %v174 = vld [vmem:[#allocation2 + $0x3e0] sm:$0xff]
    %v175 = vld [vmem:[#allocation2 + $0x3e8] sm:$0xff]
    %v176 = vld [vmem:[#allocation2 + $0x3f0] sm:$0xff]
    %v177 = vld [vmem:[#allocation2 + $0x3f8] sm:$0xff]
    %v178 = vld [vmem:[#allocation2 + $0x400] sm:$0xff]
    %v179 = vld [vmem:[#allocation2 + $0x408] sm:$0xff]
    %v180 = vld [vmem:[#allocation2 + $0x410] sm:$0xff]
    %v181 = vld [vmem:[#allocation2 + $0x418] sm:$0xff]
    %v182 = vld [vmem:[#allocation2 + $0x420] sm:$0xff]
    %v183 = vld [vmem:[#allocation2 + $0x428] sm:$0xff]
    %v184 = vld [vmem:[#allocation2 + $0x430] sm:$0xff]
    %v185 = vld [vmem:[#allocation2 + $0x438] sm:$0xff]
    %v186 = vld [vmem:[#allocation2 + $0x440] sm:$0xff]
    %v187 = vld [vmem:[#allocation2 + $0x448] sm:$0xff]
    %v188 = vld [vmem:[#allocation2 + $0x450] sm:$0xff]
    %v189 = vld [vmem:[#allocation2 + $0x458] sm:$0xff]
    %v190 = vld [vmem:[#allocation2 + $0x460] sm:$0xff]
    %v191 = vld [vmem:[#allocation2 + $0x468] sm:$0xff]
    %v192 = vld [vmem:[#allocation2 + $0x470] sm:$0xff]
    %v193 = vld [vmem:[#allocation2 + $0x478] sm:$0xff]
    %v194 = vld [vmem:[#allocation2 + $0x480] sm:$0xff]
    %v195 = vld [vmem:[#allocation2 + $0x488] sm:$0xff]
    %v196 = vld [vmem:[#allocation2 + $0x490] sm:$0xff]
    %v197 = vld [vmem:[#allocation2 + $0x498] sm:$0xff]
    %v198 = vld [vmem:[#allocation2 + $0x4a0] sm:$0xf]
    %v199 = vld [vmem:[#allocation2 + $0x4a8] sm:$0xf]
    %v200 = vld [vmem:[#allocation2 + $0x4b0] sm:$0xf]
    %v201 = vld [vmem:[#allocation2 + $0x4b8] sm:$0xf]
    %v202 = vld [vmem:[%s2] sm:$0xf]
    %v204 = vperm.slane %v202, 0
    %v205 = vperm.slane %v202, 1
    %v206 = vperm.slane %v202, 2
    %v207 = vperm.slane %v202, 3
    %vm212 = vcmask 359424
    %v214 = vsel %vm212, %v49, 0
    %vm216 = vcmask 1043456
    %v218 = vsel %vm216, %v198, 0
    %v221 = vsel %vm216, %v199, 0
    %v224 = vsel %vm216, %v200, 0
    %v227 = vsel %vm216, %v201, 0
    %229 = vmatpush.msra.mxu0 %v110
    %230 = vmatpush.msra.mxu0 %v106
    %231 = vmatpush.msra.mxu0 %v102
    %232 = vmatpush.msra.mxu0 %v98
    %233 = vmatpush.msra.mxu0 %v94
    %234 = vmatpush.msra.mxu0 %v90
    %235 = vmatpush.msra.mxu0 %v86
    %236 = vmatpush.msra.mxu0 %v82
    %237 = vmatpush.msra.mxu0 %v78
    %238 = vmatpush.msra.mxu0 %v74
    %239 = vmatpush.msra.mxu0 %v70
    %240 = vmatpush.msra.mxu0 %v66
    %241 = vmatpush.msra.mxu0 %v62
    %242 = vmatpush.msra.mxu0 %v58
    %243 = vmatpush.msra.mxu0 %v54
    %244 = vmatpush.msra.mxu0 %v50
    %245 = vmatmul.f32.gmra.mxu0 %v47
    %v246 = vpop.f32.mrf.mxu0
    %v247 = vadd.f32 %v204, %v246
    %248 = vdwg.mxu0
    %249 = vmatpush.msra.mxu0 %v174
    %250 = vmatpush.msra.mxu0 %v170
    %251 = vmatpush.msra.mxu0 %v166
    %252 = vmatpush.msra.mxu0 %v162
    %253 = vmatpush.msra.mxu0 %v158
    %254 = vmatpush.msra.mxu0 %v154
    %255 = vmatpush.msra.mxu0 %v150
    %256 = vmatpush.msra.mxu0 %v146
    %257 = vmatpush.msra.mxu0 %v142
    %258 = vmatpush.msra.mxu0 %v138
    %259 = vmatpush.msra.mxu0 %v134
    %260 = vmatpush.msra.mxu0 %v130
    %261 = vmatpush.msra.mxu0 %v126
    %262 = vmatpush.msra.mxu0 %v122
    %263 = vmatpush.msra.mxu0 %v118
    %264 = vmatpush.msra.mxu0 %v114
    %265 = vmatmul.f32.gmra.mxu0 %v48
    %v266 = vpop.f32.mrf.mxu0
    %v267 = vadd.f32 %v247, %v266
    %268 = vdwg.mxu0
    %269 = vmatpush.msra.mxu0 0.0
    %270 = vmatpush.msra.mxu0 0.0
    %271 = vmatpush.msra.mxu0 0.0
    %272 = vmatpush.msra.mxu0 0.0
    %273 = vmatpush.msra.mxu0 0.0
    %274 = vmatpush.msra.mxu0 0.0
    %275 = vmatpush.msra.mxu0 0.0
    %276 = vmatpush.msra.mxu0 0.0
    %277 = vmatpush.msra.mxu0 0.0
    %278 = vmatpush.msra.mxu0 0.0
    %279 = vmatpush.msra.mxu0 %v218
    %280 = vmatpush.msra.mxu0 %v194
    %281 = vmatpush.msra.mxu0 %v190
    %282 = vmatpush.msra.mxu0 %v186
    %283 = vmatpush.msra.mxu0 %v182
    %284 = vmatpush.msra.mxu0 %v178
    %285 = vmatmul.f32.gmra.mxu0 %v214
    %v286 = vpop.f32.mrf.mxu0
    %v287 = vadd.f32 %v267, %v286
    %288 = vdwg.mxu0
    %289 = vmatpush.msra.mxu0 %v111
    %290 = vmatpush.msra.mxu0 %v107
    %291 = vmatpush.msra.mxu0 %v103
    %292 = vmatpush.msra.mxu0 %v99
    %293 = vmatpush.msra.mxu0 %v95
    %294 = vmatpush.msra.mxu0 %v91
    %295 = vmatpush.msra.mxu0 %v87
    %296 = vmatpush.msra.mxu0 %v83
    %297 = vmatpush.msra.mxu0 %v79
    %298 = vmatpush.msra.mxu0 %v75
    %299 = vmatpush.msra.mxu0 %v71
    %300 = vmatpush.msra.mxu0 %v67
    %301 = vmatpush.msra.mxu0 %v63
    %302 = vmatpush.msra.mxu0 %v59
    %303 = vmatpush.msra.mxu0 %v55
    %304 = vmatpush.msra.mxu0 %v51
    %305 = vmatmul.f32.gmra.mxu0 %v47
    %v306 = vpop.f32.mrf.mxu0
    %v307 = vadd.f32 %v205, %v306
    %308 = vdwg.mxu0
    %309 = vmatpush.msra.mxu0 %v175
    %310 = vmatpush.msra.mxu0 %v171
    %311 = vmatpush.msra.mxu0 %v167
    %312 = vmatpush.msra.mxu0 %v163
    %313 = vmatpush.msra.mxu0 %v159
    %314 = vmatpush.msra.mxu0 %v155
    %315 = vmatpush.msra.mxu0 %v151
    %316 = vmatpush.msra.mxu0 %v147
    %317 = vmatpush.msra.mxu0 %v143
    %318 = vmatpush.msra.mxu0 %v139
    %319 = vmatpush.msra.mxu0 %v135
    %320 = vmatpush.msra.mxu0 %v131
    %321 = vmatpush.msra.mxu0 %v127
    %322 = vmatpush.msra.mxu0 %v123
    %323 = vmatpush.msra.mxu0 %v119
    %324 = vmatpush.msra.mxu0 %v115
    %325 = vmatmul.f32.gmra.mxu0 %v48
    %v326 = vpop.f32.mrf.mxu0
    %v327 = vadd.f32 %v307, %v326
    %328 = vdwg.mxu0
    %329 = vmatpush.msra.mxu0 0.0
    %330 = vmatpush.msra.mxu0 0.0
    %331 = vmatpush.msra.mxu0 0.0
    %332 = vmatpush.msra.mxu0 0.0
    %333 = vmatpush.msra.mxu0 0.0
    %334 = vmatpush.msra.mxu0 0.0
    %335 = vmatpush.msra.mxu0 0.0
    %336 = vmatpush.msra.mxu0 0.0
    %337 = vmatpush.msra.mxu0 0.0
    %338 = vmatpush.msra.mxu0 0.0
    %339 = vmatpush.msra.mxu0 %v221
    %340 = vmatpush.msra.mxu0 %v195
    %341 = vmatpush.msra.mxu0 %v191
    %342 = vmatpush.msra.mxu0 %v187
    %343 = vmatpush.msra.mxu0 %v183
    %344 = vmatpush.msra.mxu0 %v179
    %345 = vmatmul.f32.gmra.mxu0 %v214
    %v346 = vpop.f32.mrf.mxu0
    %v347 = vadd.f32 %v327, %v346
    %348 = vdwg.mxu0
    %349 = vmatpush.msra.mxu0 %v112
    %350 = vmatpush.msra.mxu0 %v108
    %351 = vmatpush.msra.mxu0 %v104
    %352 = vmatpush.msra.mxu0 %v100
    %353 = vmatpush.msra.mxu0 %v96
    %354 = vmatpush.msra.mxu0 %v92
    %355 = vmatpush.msra.mxu0 %v88
    %356 = vmatpush.msra.mxu0 %v84
    %357 = vmatpush.msra.mxu0 %v80
    %358 = vmatpush.msra.mxu0 %v76
    %359 = vmatpush.msra.mxu0 %v72
    %360 = vmatpush.msra.mxu0 %v68
    %361 = vmatpush.msra.mxu0 %v64
    %362 = vmatpush.msra.mxu0 %v60
    %363 = vmatpush.msra.mxu0 %v56
    %364 = vmatpush.msra.mxu0 %v52
    %365 = vmatmul.f32.gmra.mxu0 %v47
    %v366 = vpop.f32.mrf.mxu0
    %v367 = vadd.f32 %v206, %v366
    %368 = vdwg.mxu0
    %369 = vmatpush.msra.mxu0 %v176
    %370 = vmatpush.msra.mxu0 %v172
    %371 = vmatpush.msra.mxu0 %v168
    %372 = vmatpush.msra.mxu0 %v164
    %373 = vmatpush.msra.mxu0 %v160
    %374 = vmatpush.msra.mxu0 %v156
    %375 = vmatpush.msra.mxu0 %v152
    %376 = vmatpush.msra.mxu0 %v148
    %377 = vmatpush.msra.mxu0 %v144
    %378 = vmatpush.msra.mxu0 %v140
    %379 = vmatpush.msra.mxu0 %v136
    %380 = vmatpush.msra.mxu0 %v132
    %381 = vmatpush.msra.mxu0 %v128
    %382 = vmatpush.msra.mxu0 %v124
    %383 = vmatpush.msra.mxu0 %v120
    %384 = vmatpush.msra.mxu0 %v116
    %385 = vmatmul.f32.gmra.mxu0 %v48
    %v386 = vpop.f32.mrf.mxu0
    %v387 = vadd.f32 %v367, %v386
    %388 = vdwg.mxu0
    %389 = vmatpush.msra.mxu0 0.0
    %390 = vmatpush.msra.mxu0 0.0
    %391 = vmatpush.msra.mxu0 0.0
    %392 = vmatpush.msra.mxu0 0.0
    %393 = vmatpush.msra.mxu0 0.0
    %394 = vmatpush.msra.mxu0 0.0
    %395 = vmatpush.msra.mxu0 0.0
    %396 = vmatpush.msra.mxu0 0.0
    %397 = vmatpush.msra.mxu0 0.0
    %398 = vmatpush.msra.mxu0 0.0
    %399 = vmatpush.msra.mxu0 %v224
    %400 = vmatpush.msra.mxu0 %v196
    %401 = vmatpush.msra.mxu0 %v192
    %402 = vmatpush.msra.mxu0 %v188
    %403 = vmatpush.msra.mxu0 %v184
    %404 = vmatpush.msra.mxu0 %v180
    %405 = vmatmul.f32.gmra.mxu0 %v214
    %v406 = vpop.f32.mrf.mxu0
    %v407 = vadd.f32 %v387, %v406
    %408 = vdwg.mxu0
    %409 = vmatpush.msra.mxu0 %v113
    %410 = vmatpush.msra.mxu0 %v109
    %411 = vmatpush.msra.mxu0 %v105
    %412 = vmatpush.msra.mxu0 %v101
    %413 = vmatpush.msra.mxu0 %v97
    %414 = vmatpush.msra.mxu0 %v93
    %415 = vmatpush.msra.mxu0 %v89
    %416 = vmatpush.msra.mxu0 %v85
    %417 = vmatpush.msra.mxu0 %v81
    %418 = vmatpush.msra.mxu0 %v77
    %419 = vmatpush.msra.mxu0 %v73
    %420 = vmatpush.msra.mxu0 %v69
    %421 = vmatpush.msra.mxu0 %v65
    %422 = vmatpush.msra.mxu0 %v61
    %423 = vmatpush.msra.mxu0 %v57
    %424 = vmatpush.msra.mxu0 %v53
    %425 = vmatmul.f32.gmra.mxu0 %v47
    %v426 = vpop.f32.mrf.mxu0
    %v427 = vadd.f32 %v207, %v426
    %428 = vdwg.mxu0
    %429 = vmatpush.msra.mxu0 %v177
    %430 = vmatpush.msra.mxu0 %v173
    %431 = vmatpush.msra.mxu0 %v169
    %432 = vmatpush.msra.mxu0 %v165
    %433 = vmatpush.msra.mxu0 %v161
    %434 = vmatpush.msra.mxu0 %v157
    %435 = vmatpush.msra.mxu0 %v153
    %436 = vmatpush.msra.mxu0 %v149
    %437 = vmatpush.msra.mxu0 %v145
    %438 = vmatpush.msra.mxu0 %v141
    %439 = vmatpush.msra.mxu0 %v137
    %440 = vmatpush.msra.mxu0 %v133
    %441 = vmatpush.msra.mxu0 %v129
    %442 = vmatpush.msra.mxu0 %v125
    %443 = vmatpush.msra.mxu0 %v121
    %444 = vmatpush.msra.mxu0 %v117
    %445 = vmatmul.f32.gmra.mxu0 %v48
    %v446 = vpop.f32.mrf.mxu0
    %v447 = vadd.f32 %v427, %v446
    %448 = vdwg.mxu0
    %449 = vmatpush.msra.mxu0 0.0
    %450 = vmatpush.msra.mxu0 0.0
    %451 = vmatpush.msra.mxu0 0.0
    %452 = vmatpush.msra.mxu0 0.0
    %453 = vmatpush.msra.mxu0 0.0
    %454 = vmatpush.msra.mxu0 0.0
    %455 = vmatpush.msra.mxu0 0.0
    %456 = vmatpush.msra.mxu0 0.0
    %457 = vmatpush.msra.mxu0 0.0
    %458 = vmatpush.msra.mxu0 0.0
    %459 = vmatpush.msra.mxu0 %v227
    %460 = vmatpush.msra.mxu0 %v197
    %461 = vmatpush.msra.mxu0 %v193
    %462 = vmatpush.msra.mxu0 %v189
    %463 = vmatpush.msra.mxu0 %v185
    %464 = vmatpush.msra.mxu0 %v181
    %465 = vmatmul.f32.gmra.mxu0 %v214
    %v466 = vpop.f32.mrf.mxu0
    %v467 = vadd.f32 %v447, %v466
    %468 = vdwg.mxu0
    %vm469 = vcmp.gt.f32.partialorder %v467, 0.0
    %v470 = vsel %vm469, 1, 0
    %v471 = vcvt.s32.f32 %v470
    %v472 = vtanh.pop %v287
    %v473 = vtanh.pop %v347
    %v474 = vtanh.pop %v407
    %v475 = vld [vmem:[%s3] sm:$0xff]
    %v476 = vld [vmem:[%s3 + $0x8] sm:$0xff]
    %v477 = vld [vmem:[%s3 + $0x10] sm:$0xff]
    %v478 = vld [vmem:[%s3 + $0x18] sm:$0xff]
    %v479 = vld [vmem:[%s3 + $0x20] sm:$0xff]
    %v480 = vld [vmem:[%s3 + $0x28] sm:$0xff]
    %v481 = vld [vmem:[%s3 + $0x30] sm:$0xff]
    %v482 = vld [vmem:[%s3 + $0x38] sm:$0xff]
    %v483 = vld [vmem:[%s3 + $0x40] sm:$0xff]
    %v484 = vld [vmem:[%s3 + $0x48] sm:$0xff]
    %v485 = vld [vmem:[%s3 + $0x50] sm:$0xff]
    %v486 = vld [vmem:[%s3 + $0x58] sm:$0xff]
    %v487 = vld [vmem:[%s3 + $0x60] sm:$0xff]
    %v488 = vld [vmem:[%s3 + $0x68] sm:$0xff]
    %v489 = vld [vmem:[%s3 + $0x70] sm:$0xff]
    %v490 = vld [vmem:[%s3 + $0x78] sm:$0xff]
    %v491 = vld [vmem:[%s3 + $0x80] sm:$0xff]
    %v492 = vld [vmem:[%s3 + $0x88] sm:$0xff]
    %v493 = vld [vmem:[%s3 + $0x90] sm:$0xff]
    %v494 = vld [vmem:[%s3 + $0x98] sm:$0xff]
    %v495 = vld [vmem:[%s3 + $0xa0] sm:$0xff]
    %v496 = vld [vmem:[%s3 + $0xa8] sm:$0xff]
    %v497 = vld [vmem:[%s3 + $0xb0] sm:$0xff]
    %v498 = vld [vmem:[%s3 + $0xb8] sm:$0xff]
    %v499 = vld [vmem:[%s3 + $0xc0] sm:$0xff]
    %v500 = vld [vmem:[%s3 + $0xc8] sm:$0xff]
    %v501 = vld [vmem:[%s3 + $0xd0] sm:$0xff]
    %v502 = vld [vmem:[%s3 + $0xd8] sm:$0xff]
    %v503 = vld [vmem:[%s3 + $0xe0] sm:$0xff]
    %v504 = vld [vmem:[%s3 + $0xe8] sm:$0xff]
    %v505 = vld [vmem:[%s3 + $0xf0] sm:$0xff]
    %v506 = vld [vmem:[%s3 + $0xf8] sm:$0xff]
    %v507 = vld [vmem:[%s3 + $0x100] sm:$0xff]
    %v508 = vld [vmem:[%s3 + $0x108] sm:$0xff]
    %v509 = vld [vmem:[%s3 + $0x110] sm:$0xff]
    %v510 = vld [vmem:[%s3 + $0x118] sm:$0xff]
    %v511 = vld [vmem:[%s3 + $0x120] sm:$0xff]
    %v512 = vld [vmem:[%s3 + $0x128] sm:$0xf]
    %v513 = vld [vmem:[%s4] sm:$0x1]
    %v515 = vperm.slane %v513, 0
    %v518 = vsel %vm212, %v474, 0
    %v521 = vsel %vm216, %v512, 0
    %523 = vmatpush.msra.mxu0 %v490
    %524 = vmatpush.msra.mxu0 %v489
    %525 = vmatpush.msra.mxu0 %v488
    %526 = vmatpush.msra.mxu0 %v487
    %527 = vmatpush.msra.mxu0 %v486
    %528 = vmatpush.msra.mxu0 %v485
    %529 = vmatpush.msra.mxu0 %v484
    %530 = vmatpush.msra.mxu0 %v483
    %531 = vmatpush.msra.mxu0 %v482
    %532 = vmatpush.msra.mxu0 %v481
    %533 = vmatpush.msra.mxu0 %v480
    %534 = vmatpush.msra.mxu0 %v479
    %535 = vmatpush.msra.mxu0 %v478
    %536 = vmatpush.msra.mxu0 %v477
    %537 = vmatpush.msra.mxu0 %v476
    %538 = vmatpush.msra.mxu0 %v475
    %539 = vmatmul.f32.gmra.mxu0 %v472
    %v540 = vpop.f32.mrf.mxu0
    %v541 = vadd.f32 %v515, %v540
    %542 = vdwg.mxu0
    %543 = vmatpush.msra.mxu0 %v506
    %544 = vmatpush.msra.mxu0 %v505
    %545 = vmatpush.msra.mxu0 %v504
    %546 = vmatpush.msra.mxu0 %v503
    %547 = vmatpush.msra.mxu0 %v502
    %548 = vmatpush.msra.mxu0 %v501
    %549 = vmatpush.msra.mxu0 %v500
    %550 = vmatpush.msra.mxu0 %v499
    %551 = vmatpush.msra.mxu0 %v498
    %552 = vmatpush.msra.mxu0 %v497
    %553 = vmatpush.msra.mxu0 %v496
    %554 = vmatpush.msra.mxu0 %v495
    %555 = vmatpush.msra.mxu0 %v494
    %556 = vmatpush.msra.mxu0 %v493
    %557 = vmatpush.msra.mxu0 %v492
    %558 = vmatpush.msra.mxu0 %v491
    %559 = vmatmul.f32.gmra.mxu0 %v473
    %v560 = vpop.f32.mrf.mxu0
    %v561 = vadd.f32 %v541, %v560
    %562 = vdwg.mxu0
    %563 = vmatpush.msra.mxu0 0.0
    %564 = vmatpush.msra.mxu0 0.0
    %565 = vmatpush.msra.mxu0 0.0
    %566 = vmatpush.msra.mxu0 0.0
    %567 = vmatpush.msra.mxu0 0.0
    %568 = vmatpush.msra.mxu0 0.0
    %569 = vmatpush.msra.mxu0 0.0
    %570 = vmatpush.msra.mxu0 0.0
    %571 = vmatpush.msra.mxu0 0.0
    %572 = vmatpush.msra.mxu0 0.0
    %573 = vmatpush.msra.mxu0 %v521
    %574 = vmatpush.msra.mxu0 %v511
    %575 = vmatpush.msra.mxu0 %v510
    %576 = vmatpush.msra.mxu0 %v509
    %577 = vmatpush.msra.mxu0 %v508
    %578 = vmatpush.msra.mxu0 %v507
    %579 = vmatmul.f32.gmra.mxu0 %v518
    %v580 = vpop.f32.mrf.mxu0
    %v581 = vadd.f32 %v561, %v580
    %582 = vdwg.mxu0
    %v583 = vmax.f32 %v581, 0.0
    %v584 = vand.u32 2147483647, %v581
    %v585 = vsub.f32 0.0, %v584
    %v586 = vmul.f32 %v585, 1.442695
    %v587 = vpow.pop %v586
    %v588 = vadd.f32 %v587, 1.0
    %v589 = vlog2.pop %v588
    %v590 = vmul.f32 %v589, 0.6931472
    %v591 = vadd.f32 %v583, %v590
    %v592 = vadd.f32 %v591, 1e-08
    %v593 = vlog2.pop %v592
    %v594 = vmul.f32 %v593, 0.6931472
    %v595 = vld [vmem:[%s5] sm:$0xff]
    %v596 = vadd.f32 %v594, %v595
    %v597 = vrcp.pop 0.1
    %v598 = vmul.f32 0.1, %v597
    %v599 = vsub.f32 1.0, %v598
    %v600 = vmul.f32 %v597, %v599
    %v601 = vadd.f32 %v597, %v600
    %vm602 = vweird.f32 %v597
    %v603 = vsel %vm602, %v597, %v601
    %v604 = vmul.f32 %v596, %v603
    %vm605 = vcmask 31744
    %v606 = vsel %vm605, %v604, -inf
    %607 = vmax.xlane.f32.xlu0 %v606
    %v608 = vpop.xlane.xlu0 %607
    %v609 = vsub.f32 %v604, %v608
    %v610 = vmul.f32 %v609, 1.442695
    %v611 = vpow.pop %v610
    %v612 = vsel %vm605, %v611, 0.0
    %613 = vadd.xlane.f32.xlu0 %v612
    %v614 = vpop.xlane.xlu0 %613
    %v615 = vrcp.pop %v614
    %v616 = vmul.f32 %v611, %v615
    %v617 = vlaneseq
    %v618 = vand.u32 %v617, 127
    %v619 = vsel %vm605, %v616, -inf
    %620 = vmax.xlane.f32.xlu0 %v619
    %v621 = vpop.xlane.xlu0 %620
    %vm622 = vcmp.ge.f32.partialorder %v616, %v621
    %v623 = vsel %vm622, %v618, 4
    %v624 = vsel %vm605, %v623, 2147483647
    %v625 = vand.u32 %v624, 65535
    %v626 = vshra.s32 %v624, 16
    %v627 = vcvt.s32.f32 %v625
    %v628 = vcvt.s32.f32 %v626
    %629 = vmin.xlane.f32.xlu0 %v628
    %v630 = vpop.xlane.xlu0 %629
    %vm631 = vcmp.eq.f32.partialorder %v628, %v630
    %v632 = vsel %vm631, %v627, inf
    %633 = vmin.xlane.f32.xlu0 %v632
    %v634 = vpop.xlane.xlu0 %633
    %v635 = vcvt.f32.s32 %v634
    %v636 = vcvt.f32.s32 %v630
    %v637 = vshll.u32 %v636, 16
    %v638 = vadd.s32 %v637, %v635
    %vm639 = vcmp.eq.s32.totalorder %v618, %v638
    %v640 = vsel %vm639, 1, 0
    %v641 = vcvt.s32.f32 %v640
    %v642 = vlaneseq
    %v643 = vshrl.u32 %v642, 7
    %vm644 = vcmp.ge.s32.totalorder %v618, 16
    %v645 = vsel %vm644, 1, 0
    %vm646 = vcmp.ge.s32.totalorder %v618, 24
    %v647 = vsel %vm646, 1, 0
    %v648 = vadd.s32 %v645, %v647
    %vm649 = vcmp.ge.s32.totalorder %v618, 28
    %v650 = vsel %vm649, 1, 0
    %v651 = vadd.s32 %v648, %v650
    %vm652 = vcmp.ge.s32.totalorder %v643, %v651
    %v653 = vsel %vm652, 1, 0
    %v654 = vcvt.s32.f32 %v653
    %v656 = vsel %vm605, %v641, 0
    %v659 = vsel %vm605, %v616, 0
    %v662 = vsel %vm216, %v654, 0
    %664 = vmatpush.msra.mxu0 0.0
    %665 = vmatpush.msra.mxu0 0.0
    %666 = vmatpush.msra.mxu0 0.0
    %667 = vmatpush.msra.mxu0 0.0
    %668 = vmatpush.msra.mxu0 0.0
    %669 = vmatpush.msra.mxu0 0.0
    %670 = vmatpush.msra.mxu0 0.0
    %671 = vmatpush.msra.mxu0 0.0
    %672 = vmatpush.msra.mxu0 0.0
    %673 = vmatpush.msra.mxu0 0.0
    %674 = vmatpush.msra.mxu0 0.0
    %675 = vmatpush.msra.mxu0 0.0
    %676 = vmatpush.msra.mxu0 0.0
    %677 = vmatpush.msra.mxu0 0.0
    %678 = vmatpush.msra.mxu0 0.0
    %679 = vmatpush.msra.mxu0 %v662
    %680 = vmatmul.f32.gmra.mxu0 %v656
    %v681 = vpop.f32.mrf.mxu0
    %v682 = vadd.f32 0.0, %v681
    %683 = vmatmul.f32.gmra.mxu0 %v659
    %v684 = vpop.f32.mrf.mxu0
    %v685 = vadd.f32 0.0, %v684
    %686 = vdwg.mxu0
    %v687 = vmul.f32 %v471, %v682
    %v688 = vmul.f32 %v471, %v685
    %v689 = vld [vmem:[%s6] sm:$0xff]
    %v690 = vld [vmem:[%s6 + $0x8] sm:$0xff]
    %v691 = vld [vmem:[%s6 + $0x10] sm:$0xff]
    %v692 = vld [vmem:[%s6 + $0x18] sm:$0xff]
    %v693 = vld [vmem:[%s6 + $0x20] sm:$0xff]
    %v694 = vld [vmem:[%s6 + $0x28] sm:$0xff]
    %v695 = vld [vmem:[%s6 + $0x30] sm:$0xff]
    %v696 = vld [vmem:[%s6 + $0x38] sm:$0xff]
    %v697 = vld [vmem:[%s6 + $0x40] sm:$0xff]
    %v698 = vld [vmem:[%s6 + $0x48] sm:$0xff]
    %v699 = vld [vmem:[%s6 + $0x50] sm:$0xff]
    %v700 = vld [vmem:[%s6 + $0x58] sm:$0xff]
    %v701 = vld [vmem:[%s7] sm:$0x7]
    %v703 = vperm.slane %v701, 0
    %v704 = vperm.slane %v701, 1
    %v705 = vperm.slane %v701, 2
    %vm709 = vcmask 261120
    %v711 = vsel %vm709, %v687, 0
    %v714 = vsel %vm709, %v688, 0
    %716 = vmatpush.msra.mxu0 0.0
    %717 = vmatpush.msra.mxu0 0.0
    %718 = vmatpush.msra.mxu0 0.0
    %719 = vmatpush.msra.mxu0 0.0
    %720 = vmatpush.msra.mxu0 0.0
    %721 = vmatpush.msra.mxu0 0.0
    %722 = vmatpush.msra.mxu0 0.0
    %723 = vmatpush.msra.mxu0 0.0
    %724 = vmatpush.msra.mxu0 0.0
    %725 = vmatpush.msra.mxu0 0.0
    %726 = vmatpush.msra.mxu0 0.0
    %727 = vmatpush.msra.mxu0 0.0
    %728 = vmatpush.msra.mxu0 %v698
    %729 = vmatpush.msra.mxu0 %v695
    %730 = vmatpush.msra.mxu0 %v692
    %731 = vmatpush.msra.mxu0 %v689
    %732 = vmatmul.f32.gmra.mxu0 %v711
    %v733 = vpop.f32.mrf.mxu0
    %v734 = vadd.f32 %v703, %v733
    %735 = vmatmul.f32.gmra.mxu0 %v714
    %v736 = vpop.f32.mrf.mxu0
    %v737 = vadd.f32 %v703, %v736
    %738 = vdwg.mxu0
    %739 = vmatpush.msra.mxu0 0.0
    %740 = vmatpush.msra.mxu0 0.0
    %741 = vmatpush.msra.mxu0 0.0
    %742 = vmatpush.msra.mxu0 0.0
    %743 = vmatpush.msra.mxu0 0.0
    %744 = vmatpush.msra.mxu0 0.0
    %745 = vmatpush.msra.mxu0 0.0
    %746 = vmatpush.msra.mxu0 0.0
    %747 = vmatpush.msra.mxu0 0.0
    %748 = vmatpush.msra.mxu0 0.0
    %749 = vmatpush.msra.mxu0 0.0
    %750 = vmatpush.msra.mxu0 0.0
    %751 = vmatpush.msra.mxu0 %v699
    %752 = vmatpush.msra.mxu0 %v696
    %753 = vmatpush.msra.mxu0 %v693
    %754 = vmatpush.msra.mxu0 %v690
    %755 = vmatmul.f32.gmra.mxu0 %v711
    %v756 = vpop.f32.mrf.mxu0
    %v757 = vadd.f32 %v704, %v756
    %758 = vmatmul.f32.gmra.mxu0 %v714
    %v759 = vpop.f32.mrf.mxu0
    %v760 = vadd.f32 %v704, %v759
    %761 = vdwg.mxu0
    %762 = vmatpush.msra.mxu0 0.0
    %763 = vmatpush.msra.mxu0 0.0
    %764 = vmatpush.msra.mxu0 0.0
    %765 = vmatpush.msra.mxu0 0.0
    %766 = vmatpush.msra.mxu0 0.0
    %767 = vmatpush.msra.mxu0 0.0
    %768 = vmatpush.msra.mxu0 0.0
    %769 = vmatpush.msra.mxu0 0.0
    %770 = vmatpush.msra.mxu0 0.0
    %771 = vmatpush.msra.mxu0 0.0
    %772 = vmatpush.msra.mxu0 0.0
    %773 = vmatpush.msra.mxu0 0.0
    %774 = vmatpush.msra.mxu0 %v700
    %775 = vmatpush.msra.mxu0 %v697
    %776 = vmatpush.msra.mxu0 %v694
    %777 = vmatpush.msra.mxu0 %v691
    %778 = vmatmul.f32.gmra.mxu0 %v711
    %v779 = vpop.f32.mrf.mxu0
    %v780 = vadd.f32 %v705, %v779
    %781 = vmatmul.f32.gmra.mxu0 %v714
    %v782 = vpop.f32.mrf.mxu0
    %v783 = vadd.f32 %v705, %v782
    %784 = vdwg.mxu0
    %785 = vst [vmem:[%s8] sm:$0xff] %v734
    %786 = vst [vmem:[%s8 + $0x8] sm:$0xff] %v757
    %787 = vst [vmem:[%s8 + $0x10] sm:$0xff] %v780
    %788 = vst [vmem:[%s8 + $0x18] sm:$0xff] %v737
    %789 = vst [vmem:[%s8 + $0x20] sm:$0xff] %v760
    %790 = vst [vmem:[%s8 + $0x28] sm:$0xff] %v783
    %793 = vrot.lane.b32.xlu0 %v682, 32
    %v794 = vpop.permute.xlu0 %793
    %795 = vrot.lane.b32.xlu0 %v685, 32
    %v796 = vpop.permute.xlu0 %795
    %799 = vrot.lane.b32.xlu0 %v641, 64
    %v800 = vpop.permute.xlu0 %799
    %801 = vrot.lane.b32.xlu0 %v616, 64
    %v802 = vpop.permute.xlu0 %801
    %v805 = vsel %vm709, %v687, %v794
    %v806 = vsel %vm709, %v688, %v796
    %vm807 = vcmask 523264
    %v808 = vsel %vm807, %v805, %v800
    %v809 = vsel %vm807, %v806, %v802
    %vm810 = vcmask 556032
    %v811 = vsel %vm810, %v808, 0.0
    %v812 = vsel %vm810, %v809, 0.0
    %813 = vst [vmem:[%s9] sm:$0xff] %v811
    %814 = vst [vmem:[%s9 + $0x8] sm:$0xff] %v812
    // Predicated region
    $region38: #{code_autoencoder_forward.1} parent=1 // pred_check
      _
    $region39: #{code_autoencoder_forward.1} parent=1 // pred_check_branch
      %816 = sbr.rel (0) target = $region41
    $region40: #{code_autoencoder_forward.1} parent=1 // pred_region
      _
    $region41: #{code_autoencoder_forward.1} parent=1 // pred_fallthru
      _
    // Predicated region
    $region42: #{code_autoencoder_forward.1} parent=1 // pred_check
      _
    $region43: #{code_autoencoder_forward.1} parent=1 // pred_check_branch
      %818 = sbr.rel (0) target = $region45
    $region44: #{code_autoencoder_forward.1} parent=1 // pred_region
      _
    $region45: #{code_autoencoder_forward.1} parent=1 // pred_fallthru
      _
    // Predicated region
    $region46: #{code_autoencoder_forward.1} parent=1 // pred_check
      _
    $region47: #{code_autoencoder_forward.1} parent=1 // pred_check_branch
      %820 = sbr.rel (0) target = $region49
    $region48: #{code_autoencoder_forward.1} parent=1 // pred_region
      _
    $region49: #{code_autoencoder_forward.1} parent=1 // pred_fallthru
      _
    // Predicated region
    $region50: #{code_autoencoder_forward.1} parent=1 // pred_check
      _
    $region51: #{code_autoencoder_forward.1} parent=1 // pred_check_branch
      %822 = sbr.rel (0) target = $region53
    $region52: #{code_autoencoder_forward.1} parent=1 // pred_region
      _
    $region53: #{code_autoencoder_forward.1} parent=1 // pred_fallthru
      _
    %823 = vsyncpa [#allocation3], 1

</llo_original>
